<compile_context>
chip_gen: v5e
topology: v5e:2x2
jax: 0.10.0
libtpu: 0.0.40
codegen_flags: <defaults>
</compile_context>

<pallas_src>
import functools

import jax
import jax.numpy as jnp
from jax.experimental import pallas as pl
from jax.experimental.pallas import tpu as pltpu


# ----------------------------------------------------------------------------
# Pallas kernel: one batch element per grid step, channel-major layout.
# ----------------------------------------------------------------------------
def _nonlocal_kernel(
    x_ref,      # (1, C, Nq)       window-permuted tokens, Nq = 4*Nkv on lanes
    wqkv_ref,   # (3*IC, C+1)      [w_theta*(1/N) ; w_phi ; w_g | bias column]
    wout_ref,   # (C, IC+1)        [w_W with eval-BN folded | bias column]
    out_ref,    # (1, C, Nq)
    *, ic, n_kv,
):
    x = x_ref[0]                                   # (C, Nq)
    c = x.shape[0]

    # Fused theta/phi/g projection: one MXU pass, (3*IC, C) @ (C, Nq).
    wqkv = wqkv_ref[:, :c]                         # (3*IC, C)
    bqkv = wqkv_ref[:, c:c + 1]                    # (3*IC, 1)
    proj = jnp.dot(wqkv, x, preferred_element_type=jnp.float32) + bqkv  # (3*IC, Nq)

    theta = proj[:ic, :]                           # (IC, Nq)   (1/N pre-folded)
    pg = proj[ic:, :]                              # (2*IC, Nq) phi|g, pre-pool

    # 2x2 max-pool == max over the 4 window-position lane groups.
    pooled = jnp.maximum(
        jnp.maximum(pg[:, 0 * n_kv:1 * n_kv], pg[:, 1 * n_kv:2 * n_kv]),
        jnp.maximum(pg[:, 2 * n_kv:3 * n_kv], pg[:, 3 * n_kv:4 * n_kv]),
    )                                              # (2*IC, Nkv)
    phi = pooled[:ic, :]                           # (IC, Nkv)
    g = pooled[ic:, :]                             # (IC, Nkv)

    # f^T = phi^T @ theta  -> (Nkv, Nq), lane-dense; scale already in theta.
    f = jax.lax.dot_general(
        phi, theta, (((0,), (0,)), ((), ())), preferred_element_type=jnp.float32
    )                                              # (Nkv, Nq)

    # y (channel-major) = g @ f^T -> (IC, Nq)
    y = jnp.dot(g, f, preferred_element_type=jnp.float32)          # (IC, Nq)

    # W(y) with eval-BN folded in, plus residual.  Lane-dense (C, Nq) store.
    w = wout_ref[:, :ic]                           # (C, IC)
    b = wout_ref[:, ic:ic + 1]                     # (C, 1)
    w_y = jnp.dot(w, y, preferred_element_type=jnp.float32) + b     # (C, Nq)
    out_ref[0] = w_y + x


# ----------------------------------------------------------------------------
# Wrapper: NCHW glue (window permutation, weight packing) + pallas_call.
# ----------------------------------------------------------------------------
def nonlocal_block_pallas(x_nchw, params):
    B, C, H, W = x_nchw.shape
    IC = params["w_theta"].shape[0]
    Hp, Wp = H // 2, W // 2
    Nkv = Hp * Wp
    Nq = H * W

    # Window-permuted channel-major view (a single copy of x, pure data
    # movement): lane group [p*Nkv:(p+1)*Nkv] holds window position p = 2*di+dj
    # (i.e. x[:, :, di::2, dj::2] flattened over (Hp, Wp)).
    xr = x_nchw.reshape(B, C, Hp, 2, Wp, 2)
    x_perm = jnp.transpose(xr, (0, 1, 3, 5, 2, 4)).reshape(B, C, Nq)   # (B, C, Nq)

    # --- parameter prep (glue) ---
    eps = 1e-5
    scale = params["bn_gamma"] / jnp.sqrt(params["bn_var"] + eps)      # (C,)
    w_eff = params["w_w"] * scale[:, None]                             # (C, IC)
    b_eff = (params["b_w"] - params["bn_mean"]) * scale + params["bn_beta"]

    inv_n = 1.0 / Nkv                          # fold attention scale into theta
    w_th = params["w_theta"] * inv_n
    b_th = params["b_theta"] * inv_n

    w_qkv = jnp.concatenate(
        [
            jnp.concatenate([w_th, params["w_phi"], params["w_g"]], axis=0),
            jnp.concatenate([b_th, params["b_phi"], params["b_g"]], axis=0)[:, None],
        ],
        axis=1,
    )                                                                  # (3*IC, C+1)
    w_out = jnp.concatenate([w_eff, b_eff[:, None]], axis=1)           # (C, IC+1)

    kernel = functools.partial(_nonlocal_kernel, ic=IC, n_kv=Nkv)

    z_perm = pl.pallas_call(
        kernel,
        out_shape=jax.ShapeDtypeStruct((B, C, Nq), jnp.float32),
        grid_spec=pltpu.PrefetchScalarGridSpec(
            num_scalar_prefetch=0,
            grid=(B,),
            in_specs=[
                pl.BlockSpec((1, C, Nq), lambda b: (b, 0, 0)),
                pl.BlockSpec((3 * IC, C + 1), lambda b: (0, 0)),
                pl.BlockSpec((C, IC + 1), lambda b: (0, 0)),
            ],
            out_specs=pl.BlockSpec((1, C, Nq), lambda b: (b, 0, 0)),
        ),
        compiler_params=pltpu.CompilerParams(dimension_semantics=("parallel",)),
    )(x_perm, w_qkv, w_out)

    # Un-permute back to NCHW.
    z = z_perm.reshape(B, C, 2, 2, Hp, Wp)
    z = jnp.transpose(z, (0, 1, 4, 2, 5, 3)).reshape(B, C, H, W)
    return z


# ----------------------------------------------------------------------------
# Plain-JAX reference (mirrors the PyTorch forward exactly, eval-mode BN).
# ----------------------------------------------------------------------------
def nonlocal_block_ref(x, params):
    B, C, H, W = x.shape
    IC = params["w_theta"].shape[0]
    eps = 1e-5

    def conv1x1(inp, w, b):
        return jnp.einsum("bchw,oc->bohw", inp, w) + b[None, :, None, None]

    def maxpool2(inp):
        b, c, h, w = inp.shape
        return inp.reshape(b, c, h // 2, 2, w // 2, 2).max(axis=(3, 5))

    g_x = maxpool2(conv1x1(x, params["w_g"], params["b_g"])).reshape(B, IC, -1)
    g_x = jnp.transpose(g_x, (0, 2, 1))                                        # (B, Nkv, IC)
    theta_x = conv1x1(x, params["w_theta"], params["b_theta"]).reshape(B, IC, -1)
    theta_x = jnp.transpose(theta_x, (0, 2, 1))                                # (B, Nq, IC)
    phi_x = maxpool2(conv1x1(x, params["w_phi"], params["b_phi"])).reshape(B, IC, -1)  # (B, IC, Nkv)

    f = jnp.matmul(theta_x, phi_x)                                             # (B, Nq, Nkv)
    f_div_C = f / f.shape[-1]
    y = jnp.matmul(f_div_C, g_x)                                               # (B, Nq, IC)
    y = jnp.transpose(y, (0, 2, 1)).reshape(B, IC, H, W)

    w_y = conv1x1(y, params["w_w"], params["b_w"])
    w_y = (w_y - params["bn_mean"][None, :, None, None]) / jnp.sqrt(
        params["bn_var"][None, :, None, None] + eps
    )
    w_y = w_y * params["bn_gamma"][None, :, None, None] + params["bn_beta"][None, :, None, None]
    return w_y + x


# ----------------------------------------------------------------------------
def make_params(key, in_channels, inter_channels):
    ks = jax.random.split(key, 12)
    C, IC = in_channels, inter_channels
    n = lambda k, shp, s=0.2: (jax.random.normal(k, shp, jnp.float32) * s)
    return {
        "w_g": n(ks[0], (IC, C)),
        "b_g": n(ks[1], (IC,)),
        "w_theta": n(ks[2], (IC, C)),
        "b_theta": n(ks[3], (IC,)),
        "w_phi": n(ks[4], (IC, C)),
        "b_phi": n(ks[5], (IC,)),
        "w_w": n(ks[6], (C, IC)),
        "b_w": n(ks[7], (C,)),
        "bn_gamma": 1.0 + n(ks[8], (C,), 0.1),
        "bn_beta": n(ks[9], (C,), 0.1),
        "bn_mean": n(ks[10], (C,), 0.1),
        "bn_var": 1.0 + jnp.abs(n(ks[11], (C,), 0.1)),
    }


if __name__ == "__main__":
    key = jax.random.PRNGKey(0)
    kx, kp = jax.random.split(key)

    B, C, H, W = 2, 4, 16, 16
    IC = C // 2
    x = jax.random.normal(kx, (B, C, H, W), jnp.float32)
    params = make_params(kp, C, IC)

    z = jax.jit(nonlocal_block_pallas)(x, params)
    z = jax.block_until_ready(z)

    z_ref = nonlocal_block_ref(x, params)
    assert z.shape == (B, C, H, W)
    assert jnp.allclose(z, z_ref, rtol=1e-5, atol=1e-5), (
        f"max abs err {jnp.max(jnp.abs(z - z_ref))}"
    )

    print("KERNEL_OK")
</pallas_src>

<mosaic_0001>
module attributes {stable_mosaic.version = 11 : i64} {
  func.func @_nonlocal_kernel(%arg0: i32, %arg1: memref<1x4x256xf32, #tpu.memory_space<vmem>>, %arg2: memref<6x5xf32, #tpu.memory_space<vmem>>, %arg3: memref<4x3xf32, #tpu.memory_space<vmem>>, %arg4: memref<1x4x256xf32, #tpu.memory_space<vmem>>) attributes {dimension_semantics = [#tpu.dimension_semantics<parallel>], iteration_bounds = array<i64: 2>, scalar_prefetch = 0 : i64, scratch_operands = 0 : i64, tpu.core_type = #tpu.core_type<tc>, window_params = [{transform_indices = @transform_0, window_bounds = array<i64: 1, 4, 256>}, {pipeline_mode = #tpu.pipeline_mode<synchronous>, transform_indices = @transform_1, window_bounds = array<i64: 6, 5>}, {pipeline_mode = #tpu.pipeline_mode<synchronous>, transform_indices = @transform_2, window_bounds = array<i64: 4, 3>}, {transform_indices = @transform_3, window_bounds = array<i64: 1, 4, 256>}]} {
    %c0 = arith.constant 0 : index
    %c0_0 = arith.constant 0 : index
    %c0_1 = arith.constant 0 : index
    %0 = vector.load %arg1[%c0, %c0_0, %c0_1] : memref<1x4x256xf32, #tpu.memory_space<vmem>>, vector<1x4x256xf32>
    %1 = vector.shape_cast %0 : vector<1x4x256xf32> to vector<4x256xf32>
    %c0_2 = arith.constant 0 : index
    %c0_3 = arith.constant 0 : index
    %2 = vector.load %arg2[%c0_2, %c0_3] : memref<6x5xf32, #tpu.memory_space<vmem>>, vector<6x4xf32>
    %c0_4 = arith.constant 0 : index
    %c4 = arith.constant 4 : index
    %3 = vector.load %arg2[%c0_4, %c4] : memref<6x5xf32, #tpu.memory_space<vmem>>, vector<6x1xf32>
    %cst = arith.constant dense<0.000000e+00> : vector<6x256xf32>
    %4 = tpu.matmul %2, %1, %cst {dimension_numbers = #tpu.dot_dimension_numbers<[1], [0], [0], [1], [0, 0, 1, 1], [], []>} : vector<6x4xf32>, vector<4x256xf32>, vector<6x256xf32> -> vector<6x256xf32>
    %5 = vector.broadcast %3 : vector<6x1xf32> to vector<6x256xf32>
    %6 = arith.addf %4, %5 : vector<6x256xf32>
    %7 = vector.extract_strided_slice %6 {offsets = [0, 0], sizes = [2, 256], strides = [1, 1]} : vector<6x256xf32> to vector<2x256xf32>
    %8 = vector.extract_strided_slice %6 {offsets = [2, 0], sizes = [4, 256], strides = [1, 1]} : vector<6x256xf32> to vector<4x256xf32>
    %9 = vector.extract_strided_slice %8 {offsets = [0, 0], sizes = [4, 64], strides = [1, 1]} : vector<4x256xf32> to vector<4x64xf32>
    %10 = vector.extract_strided_slice %8 {offsets = [0, 64], sizes = [4, 64], strides = [1, 1]} : vector<4x256xf32> to vector<4x64xf32>
    %11 = arith.maximumf %9, %10 : vector<4x64xf32>
    %12 = vector.extract_strided_slice %8 {offsets = [0, 128], sizes = [4, 64], strides = [1, 1]} : vector<4x256xf32> to vector<4x64xf32>
    %13 = vector.extract_strided_slice %8 {offsets = [0, 192], sizes = [4, 64], strides = [1, 1]} : vector<4x256xf32> to vector<4x64xf32>
    %14 = arith.maximumf %12, %13 : vector<4x64xf32>
    %15 = arith.maximumf %11, %14 : vector<4x64xf32>
    %16 = vector.extract_strided_slice %15 {offsets = [0, 0], sizes = [2, 64], strides = [1, 1]} : vector<4x64xf32> to vector<2x64xf32>
    %17 = vector.extract_strided_slice %15 {offsets = [2, 0], sizes = [2, 64], strides = [1, 1]} : vector<4x64xf32> to vector<2x64xf32>
    %cst_5 = arith.constant dense<0.000000e+00> : vector<64x256xf32>
    %18 = tpu.matmul %16, %7, %cst_5 {dimension_numbers = #tpu.dot_dimension_numbers<[0], [0], [1], [1], [0, 1, 1, 1], [], []>} : vector<2x64xf32>, vector<2x256xf32>, vector<64x256xf32> -> vector<64x256xf32>
    %cst_6 = arith.constant dense<0.000000e+00> : vector<2x256xf32>
    %19 = tpu.matmul %17, %18, %cst_6 {dimension_numbers = #tpu.dot_dimension_numbers<[1], [0], [0], [1], [0, 0, 1, 1], [], []>} : vector<2x64xf32>, vector<64x256xf32>, vector<2x256xf32> -> vector<2x256xf32>
    %c0_7 = arith.constant 0 : index
    %c0_8 = arith.constant 0 : index
    %20 = vector.load %arg3[%c0_7, %c0_8] : memref<4x3xf32, #tpu.memory_space<vmem>>, vector<4x2xf32>
    %c0_9 = arith.constant 0 : index
    %c2 = arith.constant 2 : index
    %21 = vector.load %arg3[%c0_9, %c2] : memref<4x3xf32, #tpu.memory_space<vmem>>, vector<4x1xf32>
    %cst_10 = arith.constant dense<0.000000e+00> : vector<4x256xf32>
    %22 = tpu.matmul %20, %19, %cst_10 {dimension_numbers = #tpu.dot_dimension_numbers<[1], [0], [0], [1], [0, 0, 1, 1], [], []>} : vector<4x2xf32>, vector<2x256xf32>, vector<4x256xf32> -> vector<4x256xf32>
    %23 = vector.broadcast %21 : vector<4x1xf32> to vector<4x256xf32>
    %24 = arith.addf %22, %23 : vector<4x256xf32>
    %25 = arith.addf %24, %1 : vector<4x256xf32>
    %c0_11 = arith.constant 0 : index
    %c0_12 = arith.constant 0 : index
    %c0_13 = arith.constant 0 : index
    %26 = vector.load %arg4[%c0_11, %c0_12, %c0_13] : memref<1x4x256xf32, #tpu.memory_space<vmem>>, vector<1x4x256xf32>
    %27 = vector.shape_cast %26 : vector<1x4x256xf32> to vector<4x256xf32>
    %28 = vector.shape_cast %25 : vector<4x256xf32> to vector<1x4x256xf32>
    tpu.vector_store %arg4[%c0_11, %c0_12, %c0_13], %28 {strides = array<i32>} : memref<1x4x256xf32, #tpu.memory_space<vmem>>, vector<1x4x256xf32>,
    return
  }
  func.func @transform_0(%arg0: i32) -> (i32, i32, i32) {
    %c0_i32 = arith.constant 0 : i32
    %c0_i32_0 = arith.constant 0 : i32
    %c0_i32_1 = arith.constant 0 : i32
    return %arg0, %c0_i32, %c0_i32_0 : i32, i32, i32
  }
  func.func @transform_1(%arg0: i32) -> (i32, i32) {
    %c0_i32 = arith.constant 0 : i32
    %c0_i32_0 = arith.constant 0 : i32
    %c0_i32_1 = arith.constant 0 : i32
    return %c0_i32, %c0_i32_0 : i32, i32
  }
  func.func @transform_2(%arg0: i32) -> (i32, i32) {
    %c0_i32 = arith.constant 0 : i32
    %c0_i32_0 = arith.constant 0 : i32
    %c0_i32_1 = arith.constant 0 : i32
    return %c0_i32, %c0_i32_0 : i32, i32
  }
  func.func @transform_3(%arg0: i32) -> (i32, i32, i32) {
    %c0_i32 = arith.constant 0 : i32
    %c0_i32_0 = arith.constant 0 : i32
    %c0_i32_1 = arith.constant 0 : i32
    return %arg0, %c0_i32, %c0_i32_0 : i32, i32, i32
  }
}

</mosaic_0001>

<llo_original>
// kernel: nonlocal_block_pallas.1
$region0: #{nonlocal_block_pallas.1}
  #allocation0 [shape = 'u32[]', space=smem, size = 0x4, offset = 0x4, fixed_abs, tag = 'smem constant byte address 0x4 - core index']
  #allocation1 [shape = 'u32[72,128]{1,0:T(1,128)}', space=vmem, size = 0x9000, scoped, tag = 'internal scratch']
  %s0 = inlined_call_operand.vmem [shape: f32[2,4,256], index: 0, kind: input, shape index: {}]
  %s1 = inlined_call_operand.vmem [shape: f32[6,5], index: 1, kind: input, shape index: {}]
  %s2 = inlined_call_operand.vmem [shape: f32[4,3], index: 2, kind: input, shape index: {}]
  %s3 = inlined_call_operand.vmem [shape: f32[2,4,256], index: 3, kind: output, shape index: {}]
  %s4 = sld [smem:[#allocation0]]
  $region45: #{nonlocal_block_pallas.1} parent=0
    _
  %s6 = ssub.s32 1, %s4
  %s7 = scalar_select 0, %s6, %s4
  loop: start=0, step=1, limit=4
  $region2: #{nonlocal_block_pallas.1} parent=0 // loop_pre_header
    _
  $region3: #{nonlocal_block_pallas.1} parent=0 // loop_header
    %s9 = sphi 0, %s13
    %p10 = scmp.ge.s32.totalorder %s9, 4
    %s19 = sphi 0, %s21
    %s22 = sphi 0, %s19
    %s23 = sphi 0, %s22
    %s39 = sphi 0, %s23
    %s43 = sphi 0, %s43
    %s45 = sphi 0, %s43
    %s46 = sphi 0, %s45
    %s60 = sphi 0, %s46
    %s64 = sphi 0, %s64
    %s66 = sphi 0, %s64
    %s67 = sphi 0, %s66
    %s81 = sphi 0, %s67
    %s87 = sphi 0, %s89
    %s90 = sphi 0, %s87
    %s91 = sphi 0, %s90
    %s107 = sphi 0, %s91
  $region4: #{nonlocal_block_pallas.1} parent=0 // loop_header_branch
    %12 = sbr.rel (%p10) target = $region8
  $region5: #{nonlocal_block_pallas.1} parent=0 // loop_body
    %s14 = ssub.s32 %s9, 1
    %s15 = ssub.s32 %s9, 2
    %s16 = sadd.s32 %s9, 1
    %s17 = ssub.s32 %s9, %s16
    %p18 = scmp.eq.s32.totalorder %s17, 0
    %s20 = sadd.s32 %s19, 1
    %s21 = scalar_select %p18, %s19, %s20
    %p24 = pneg %p18
    %p25 = scmp.eq.s32.totalorder %s9, 1
    %p26 = por %p24, %p25
    %p27 = scmp.ne.s32.totalorder %s19, %s22
    %p28 = scmp.eq.s32.totalorder %s9, 0
    %p29 = por %p27, %p28
    %p30 = scmp.ne.s32.totalorder %s19, %s22
    %p31 = scmp.eq.s32.totalorder %s14, 1
    %p32 = por %p30, %p31
    %p33 = scmp.ne.s32.totalorder %s22, %s23
    %p34 = scmp.eq.s32.totalorder %s14, 0
    %p35 = por %p33, %p34
    %p36 = scmp.ne.s32.totalorder %s22, %s23
    %p37 = scmp.eq.s32.totalorder %s15, 1
    %p38 = por %p36, %p37
    %p40 = scmp.ne.s32.totalorder %s23, %s39
    %p41 = scmp.eq.s32.totalorder %s15, 0
    %p42 = por %p40, %p41
    %s44 = sadd.s32 %s43, 1
    %p47 = scmp.eq.s32.totalorder %s9, 1
    %p48 = scmp.ne.s32.totalorder %s43, %s45
    %p49 = scmp.eq.s32.totalorder %s9, 0
    %p50 = por %p48, %p49
    %p51 = scmp.ne.s32.totalorder %s43, %s45
    %p52 = scmp.eq.s32.totalorder %s14, 1
    %p53 = por %p51, %p52
    %p54 = scmp.ne.s32.totalorder %s45, %s46
    %p55 = scmp.eq.s32.totalorder %s14, 0
    %p56 = por %p54, %p55
    %p57 = scmp.ne.s32.totalorder %s45, %s46
    %p58 = scmp.eq.s32.totalorder %s15, 1
    %p59 = por %p57, %p58
    %p61 = scmp.ne.s32.totalorder %s46, %s60
    %p62 = scmp.eq.s32.totalorder %s15, 0
    %p63 = por %p61, %p62
    %s65 = sadd.s32 %s64, 1
    %p68 = scmp.eq.s32.totalorder %s9, 1
    %p69 = scmp.ne.s32.totalorder %s64, %s66
    %p70 = scmp.eq.s32.totalorder %s9, 0
    %p71 = por %p69, %p70
    %p72 = scmp.ne.s32.totalorder %s64, %s66
    %p73 = scmp.eq.s32.totalorder %s14, 1
    %p74 = por %p72, %p73
    %p75 = scmp.ne.s32.totalorder %s66, %s67
    %p76 = scmp.eq.s32.totalorder %s14, 0
    %p77 = por %p75, %p76
    %p78 = scmp.ne.s32.totalorder %s66, %s67
    %p79 = scmp.eq.s32.totalorder %s15, 1
    %p80 = por %p78, %p79
    %p82 = scmp.ne.s32.totalorder %s67, %s81
    %p83 = scmp.eq.s32.totalorder %s15, 0
    %p84 = por %p82, %p83
    %s85 = ssub.s32 %s9, %s16
    %p86 = scmp.eq.s32.totalorder %s85, 0
    %s88 = sadd.s32 %s87, 1
    %s89 = scalar_select %p86, %s87, %s88
    %p92 = pneg %p86
    %p93 = scmp.eq.s32.totalorder %s9, 1
    %p94 = por %p92, %p93
    %p95 = scmp.ne.s32.totalorder %s87, %s90
    %p96 = scmp.eq.s32.totalorder %s9, 0
    %p97 = por %p95, %p96
    %p98 = scmp.ne.s32.totalorder %s87, %s90
    %p99 = scmp.eq.s32.totalorder %s14, 1
    %p100 = por %p98, %p99
    %p101 = scmp.ne.s32.totalorder %s90, %s91
    %p102 = scmp.eq.s32.totalorder %s14, 0
    %p103 = por %p101, %p102
    %p104 = scmp.ne.s32.totalorder %s90, %s91
    %p105 = scmp.eq.s32.totalorder %s15, 1
    %p106 = por %p104, %p105
    %p108 = scmp.ne.s32.totalorder %s91, %s107
    %p109 = scmp.eq.s32.totalorder %s15, 0
    %p110 = por %p108, %p109
    %p111 = scmp.le.s32.totalorder 1, %s9
    %p112 = scmp.lt.s32.totalorder %s9, 3
    %p113 = pnand %p111, %p112
    %p114 = pneg %p113
    // Predicated region
    $region9: #{nonlocal_block_pallas.1} parent=5 // pred_check
      _
    $region10: #{nonlocal_block_pallas.1} parent=5 // pred_check_branch
      %116 = sbr.rel (%p113) target = $region12
    $region11: #{nonlocal_block_pallas.1} parent=5 // pred_region
      %s117 = ssub.s32 %s9, 1
      // Predicated region
      $region13: #{nonlocal_block_pallas.1} parent=11 // pred_check
        %p118 = pneg %p56
      $region14: #{nonlocal_block_pallas.1} parent=11 // pred_check_branch
        %120 = sbr.rel (%p118) target = $region16
      $region15: #{nonlocal_block_pallas.1} parent=11 // pred_region
        _
      $region16: #{nonlocal_block_pallas.1} parent=11 // pred_fallthru
        _
      // Predicated region
      $region17: #{nonlocal_block_pallas.1} parent=11 // pred_check
        %p121 = pneg %p77
      $region18: #{nonlocal_block_pallas.1} parent=11 // pred_check_branch
        %123 = sbr.rel (%p121) target = $region20
      $region19: #{nonlocal_block_pallas.1} parent=11 // pred_region
        _
      $region20: #{nonlocal_block_pallas.1} parent=11 // pred_fallthru
        _
    $region12: #{nonlocal_block_pallas.1} parent=5 // pred_fallthru
      _
    %p124 = scmp.lt.s32.totalorder %s9, 2
    // Predicated region
    $region21: #{nonlocal_block_pallas.1} parent=5 // pred_check
      %p125 = pneg %p124
    $region22: #{nonlocal_block_pallas.1} parent=5 // pred_check_branch
      %127 = sbr.rel (%p125) target = $region24
    $region23: #{nonlocal_block_pallas.1} parent=5 // pred_region
      // Predicated region
      $region25: #{nonlocal_block_pallas.1} parent=23 // pred_check
        %p128 = pneg %p29
      $region26: #{nonlocal_block_pallas.1} parent=23 // pred_check_branch
        %130 = sbr.rel (%p128) target = $region28
      $region27: #{nonlocal_block_pallas.1} parent=23 // pred_region
        %p131 = scmp.lt.s32.totalorder %s9, 1
        %s132 = scalar_select %p131, %s9, 1
        %s133 = smul.addr %s132, 2
        %s134 = smul.addr %s133, 4
        %s135 = scalar_lea.vmem %s0, %s134
      $region28: #{nonlocal_block_pallas.1} parent=23 // pred_fallthru
        _
    $region24: #{nonlocal_block_pallas.1} parent=5 // pred_fallthru
      _
    %p136 = scmp.le.s32.totalorder 1, %s9
    %p137 = scmp.lt.s32.totalorder %s9, 3
    %p138 = pnand %p136, %p137
    %p139 = pneg %p138
    // Predicated region
    $region29: #{nonlocal_block_pallas.1} parent=5 // pred_check
      _
    $region30: #{nonlocal_block_pallas.1} parent=5 // pred_check_branch
      %141 = sbr.rel (%p138) target = $region32
    $region31: #{nonlocal_block_pallas.1} parent=5 // pred_region
      %s142 = ssub.s32 %s9, 1
      %p143 = scmp.lt.s32.totalorder %s14, 1
      %s144 = scalar_select %p143, %s14, 1
      %s145 = smul.addr %s144, 2
      %s146 = smul.addr %s145, 4
      %s147 = scalar_lea.vmem %s0, %s146
      %p148 = pneg %p35
      %p149 = pneg %p32
      %p150 = pneg %p56
      %p151 = pneg %p53
      %p152 = pneg %p77
      %p153 = pneg %p74
      %p154 = pneg %p103
      %p155 = pneg %p100
      %p156 = scmp.lt.s32.totalorder %s14, 1
      %s157 = scalar_select %p156, %s14, 1
      %s158 = smul.addr %s157, 2
      %s159 = smul.addr %s158, 4
      %s160 = scalar_lea.vmem %s3, %s159
      %p161 = scmp.lt.s32.totalorder %s14, 1
      %s162 = scalar_select %p161, %s14, 1
      %s163 = smul.addr %s162, 2
      %s164 = smul.addr %s163, 4
      %s165 = scalar_lea.vmem %s0, %s164
      %p166 = scmp.lt.s32.totalorder %s14, 1
      %s167 = scalar_select %p166, %s14, 1
      %s168 = smul.addr %s167, 2
      %s169 = smul.addr %s168, 4
      %s170 = scalar_lea.vmem %s3, %s169
      %v171 = vld [vmem:[%s165] sm:$0xff]
      %v172 = vld [vmem:[%s1] sm:$0x3f]
      %174 = vset.pattern.permute.xlu0 4
      %175 = vperm.xlu0 %174, %v172
      %v176 = vpop.permute.xlu0 %175
      %179 = vst [vmem:[#allocation1] ss:$2 sm:$0xff] %v171
      %v180 = vld.sshfl [vmem:[#allocation1] sm:$0xff pattern:$0x75316420]
      %v181 = vld.sshfl [vmem:[#allocation1 + $0x8] sm:$0xff pattern:$0x75316420]
      %vm182 = vcmask 31744
      %v183 = vsel %vm182, %v172, 0
      %vm185 = vcmask 1043456
      %v186 = vsel %vm185, %v180, 0
      %v188 = vsel %vm185, %v181, 0
      %190 = vmatpush.msra.mxu0 0.0
      %191 = vmatpush.msra.mxu0 0.0
      %192 = vmatpush.msra.mxu0 0.0
      %193 = vmatpush.msra.mxu0 0.0
      %194 = vmatpush.msra.mxu0 0.0
      %195 = vmatpush.msra.mxu0 0.0
      %196 = vmatpush.msra.mxu0 0.0
      %197 = vmatpush.msra.mxu0 0.0
      %198 = vmatpush.msra.mxu0 0.0
      %199 = vmatpush.msra.mxu0 0.0
      %200 = vmatpush.msra.mxu0 0.0
      %201 = vmatpush.msra.mxu0 0.0
      %202 = vmatpush.msra.mxu0 0.0
      %203 = vmatpush.msra.mxu0 0.0
      %204 = vmatpush.msra.mxu0 0.0
      %205 = vmatpush.msra.mxu0 %v186
      %206 = vmatmul.f32.gmra.mxu0 %v183
      %v207 = vpop.f32.mrf.mxu0
      %v208 = vadd.f32 %v176, %v207
      %209 = vdwg.mxu0
      %210 = vmatpush.msra.mxu0 0.0
      %211 = vmatpush.msra.mxu0 0.0
      %212 = vmatpush.msra.mxu0 0.0
      %213 = vmatpush.msra.mxu0 0.0
      %214 = vmatpush.msra.mxu0 0.0
      %215 = vmatpush.msra.mxu0 0.0
      %216 = vmatpush.msra.mxu0 0.0
      %217 = vmatpush.msra.mxu0 0.0
      %218 = vmatpush.msra.mxu0 0.0
      %219 = vmatpush.msra.mxu0 0.0
      %220 = vmatpush.msra.mxu0 0.0
      %221 = vmatpush.msra.mxu0 0.0
      %222 = vmatpush.msra.mxu0 0.0
      %223 = vmatpush.msra.mxu0 0.0
      %224 = vmatpush.msra.mxu0 0.0
      %225 = vmatpush.msra.mxu0 %v188
      %226 = vmatmul.f32.gmra.mxu0 %v183
      %v227 = vpop.f32.mrf.mxu0
      %v228 = vadd.f32 %v176, %v227
      %229 = vdwg.mxu0
      %231 = vrot.lane.b32.xlu0 %v208, 64
      %v232 = vpop.permute.xlu0 %231
      %v234 = vmax.f32 %v208, %v232
      %236 = vrot.lane.b32.xlu0 %v228, 64
      %v237 = vpop.permute.xlu0 %236
      %v239 = vmax.f32 %v228, %v237
      %v240 = vmax.f32 %v234, %v239
      %v242 = vrot.slane %v240, 2
      %244 = vxpose.xlu0.b32.start [1/16] %v242, 128
      %245 = vxpose.xlu0.b32.cont [2/16] 0.0, 128
      %246 = vxpose.xlu0.b32.cont [3/16] 0.0, 128
      %247 = vxpose.xlu0.b32.cont [4/16] 0.0, 128
      %248 = vxpose.xlu0.b32.cont [5/16] 0.0, 128
      %249 = vxpose.xlu0.b32.cont [6/16] 0.0, 128
      %250 = vxpose.xlu0.b32.cont [7/16] 0.0, 128
      %251 = vxpose.xlu0.b32.cont [8/16] 0.0, 128
      %252 = vxpose.xlu0.b32.cont [9/16] 0.0, 128
      %253 = vxpose.xlu0.b32.cont [10/16] 0.0, 128
      %254 = vxpose.xlu0.b32.cont [11/16] 0.0, 128
      %255 = vxpose.xlu0.b32.cont [12/16] 0.0, 128
      %256 = vxpose.xlu0.b32.cont [13/16] 0.0, 128
      %257 = vxpose.xlu0.b32.cont [14/16] 0.0, 128
      %258 = vxpose.xlu0.b32.cont [15/16] 0.0, 128
      %259 = vxpose.xlu0.b32.end [16/16] 0.0, 128
      %v260 = vpop.trf.xlu0
      %v261 = vpop.trf.xlu0
      %v262 = vpop.trf.xlu0
      %v263 = vpop.trf.xlu0
      %v264 = vpop.trf.xlu0
      %v265 = vpop.trf.xlu0
      %v266 = vpop.trf.xlu0
      %v267 = vpop.trf.xlu0
      %v268 = vpop.trf.xlu0
      %v269 = vpop.trf.xlu0
      %v270 = vpop.trf.xlu0
      %v271 = vpop.trf.xlu0
      %v272 = vpop.trf.xlu0
      %v273 = vpop.trf.xlu0
      %v274 = vpop.trf.xlu0
      %v275 = vpop.trf.xlu0
      %vm276 = vcmask 15360
      %v278 = vsel %vm276, %v260, 0
      %v281 = vsel %vm276, %v261, 0
      %v284 = vsel %vm276, %v262, 0
      %v287 = vsel %vm276, %v263, 0
      %v290 = vsel %vm276, %v264, 0
      %v293 = vsel %vm276, %v265, 0
      %v296 = vsel %vm276, %v266, 0
      %v299 = vsel %vm276, %v267, 0
      %vm301 = vcmask 1041408
      %v302 = vsel %vm301, %v208, 0
      %v304 = vsel %vm301, %v228, 0
      %306 = vmatpush.msra.mxu0 0.0
      %307 = vmatpush.msra.mxu0 0.0
      %308 = vmatpush.msra.mxu0 0.0
      %309 = vmatpush.msra.mxu0 0.0
      %310 = vmatpush.msra.mxu0 0.0
      %311 = vmatpush.msra.mxu0 0.0
      %312 = vmatpush.msra.mxu0 0.0
      %313 = vmatpush.msra.mxu0 0.0
      %314 = vmatpush.msra.mxu0 0.0
      %315 = vmatpush.msra.mxu0 0.0
      %316 = vmatpush.msra.mxu0 0.0
      %317 = vmatpush.msra.mxu0 0.0
      %318 = vmatpush.msra.mxu0 0.0
      %319 = vmatpush.msra.mxu0 0.0
      %320 = vmatpush.msra.mxu0 0.0
      %321 = vmatpush.msra.mxu0 %v302
      %322 = vmatmul.f32.gmra.mxu0 %v278
      %v323 = vpop.f32.mrf.mxu0
      %v324 = vadd.f32 0.0, %v323
      %325 = vmatmul.f32.gmra.mxu0 %v281
      %v326 = vpop.f32.mrf.mxu0
      %v327 = vadd.f32 0.0, %v326
      %328 = vmatmul.f32.gmra.mxu0 %v284
      %v329 = vpop.f32.mrf.mxu0
      %v330 = vadd.f32 0.0, %v329
      %331 = vmatmul.f32.gmra.mxu0 %v287
      %v332 = vpop.f32.mrf.mxu0
      %v333 = vadd.f32 0.0, %v332
      %334 = vmatmul.f32.gmra.mxu0 %v290
      %v335 = vpop.f32.mrf.mxu0
      %v336 = vadd.f32 0.0, %v335
      %337 = vmatmul.f32.gmra.mxu0 %v293
      %v338 = vpop.f32.mrf.mxu0
      %v339 = vadd.f32 0.0, %v338
      %340 = vmatmul.f32.gmra.mxu0 %v296
      %v341 = vpop.f32.mrf.mxu0
      %v342 = vadd.f32 0.0, %v341
      %343 = vmatmul.f32.gmra.mxu0 %v299
      %v344 = vpop.f32.mrf.mxu0
      %v345 = vadd.f32 0.0, %v344
      %346 = vdwg.mxu0
      %347 = vmatpush.msra.mxu0 0.0
      %348 = vmatpush.msra.mxu0 0.0
      %349 = vmatpush.msra.mxu0 0.0
      %350 = vmatpush.msra.mxu0 0.0
      %351 = vmatpush.msra.mxu0 0.0
      %352 = vmatpush.msra.mxu0 0.0
      %353 = vmatpush.msra.mxu0 0.0
      %354 = vmatpush.msra.mxu0 0.0
      %355 = vmatpush.msra.mxu0 0.0
      %356 = vmatpush.msra.mxu0 0.0
      %357 = vmatpush.msra.mxu0 0.0
      %358 = vmatpush.msra.mxu0 0.0
      %359 = vmatpush.msra.mxu0 0.0
      %360 = vmatpush.msra.mxu0 0.0
      %361 = vmatpush.msra.mxu0 0.0
      %362 = vmatpush.msra.mxu0 %v304
      %363 = vmatmul.f32.gmra.mxu0 %v278
      %v364 = vpop.f32.mrf.mxu0
      %v365 = vadd.f32 0.0, %v364
      %366 = vmatmul.f32.gmra.mxu0 %v281
      %v367 = vpop.f32.mrf.mxu0
      %v368 = vadd.f32 0.0, %v367
      %369 = vmatmul.f32.gmra.mxu0 %v284
      %v370 = vpop.f32.mrf.mxu0
      %v371 = vadd.f32 0.0, %v370
      %372 = vmatmul.f32.gmra.mxu0 %v287
      %v373 = vpop.f32.mrf.mxu0
      %v374 = vadd.f32 0.0, %v373
      %375 = vmatmul.f32.gmra.mxu0 %v290
      %v376 = vpop.f32.mrf.mxu0
      %v377 = vadd.f32 0.0, %v376
      %378 = vmatmul.f32.gmra.mxu0 %v293
      %v379 = vpop.f32.mrf.mxu0
      %v380 = vadd.f32 0.0, %v379
      %381 = vmatmul.f32.gmra.mxu0 %v296
      %v382 = vpop.f32.mrf.mxu0
      %v383 = vadd.f32 0.0, %v382
      %384 = vmatmul.f32.gmra.mxu0 %v299
      %v385 = vpop.f32.mrf.mxu0
      %v386 = vadd.f32 0.0, %v385
      %387 = vdwg.mxu0
      %v388 = vrot.slane %v240, 4
      %vm389 = vcmask 523264
      %v390 = vsel %vm389, %v388, 0
      %392 = vmatpush.msra.mxu0 0.0
      %393 = vmatpush.msra.mxu0 0.0
      %394 = vmatpush.msra.mxu0 0.0
      %395 = vmatpush.msra.mxu0 0.0
      %396 = vmatpush.msra.mxu0 0.0
      %397 = vmatpush.msra.mxu0 0.0
      %398 = vmatpush.msra.mxu0 0.0
      %399 = vmatpush.msra.mxu0 0.0
      %400 = vmatpush.msra.mxu0 %v345
      %401 = vmatpush.msra.mxu0 %v342
      %402 = vmatpush.msra.mxu0 %v339
      %403 = vmatpush.msra.mxu0 %v336
      %404 = vmatpush.msra.mxu0 %v333
      %405 = vmatpush.msra.mxu0 %v330
      %406 = vmatpush.msra.mxu0 %v327
      %407 = vmatpush.msra.mxu0 %v324
      %408 = vmatmul.f32.gmra.mxu0 %v390
      %v409 = vpop.f32.mrf.mxu0
      %v410 = vadd.f32 0.0, %v409
      %411 = vdwg.mxu0
      %412 = vmatpush.msra.mxu0 0.0
      %413 = vmatpush.msra.mxu0 0.0
      %414 = vmatpush.msra.mxu0 0.0
      %415 = vmatpush.msra.mxu0 0.0
      %416 = vmatpush.msra.mxu0 0.0
      %417 = vmatpush.msra.mxu0 0.0
      %418 = vmatpush.msra.mxu0 0.0
      %419 = vmatpush.msra.mxu0 0.0
      %420 = vmatpush.msra.mxu0 %v386
      %421 = vmatpush.msra.mxu0 %v383
      %422 = vmatpush.msra.mxu0 %v380
      %423 = vmatpush.msra.mxu0 %v377
      %424 = vmatpush.msra.mxu0 %v374
      %425 = vmatpush.msra.mxu0 %v371
      %426 = vmatpush.msra.mxu0 %v368
      %427 = vmatpush.msra.mxu0 %v365
      %428 = vmatmul.f32.gmra.mxu0 %v390
      %v429 = vpop.f32.mrf.mxu0
      %v430 = vadd.f32 0.0, %v429
      %431 = vdwg.mxu0
      %v432 = vld [vmem:[%s2] sm:$0xf]
      %434 = vset.pattern.permute.xlu0 2
      %435 = vperm.xlu0 %434, %v432
      %v436 = vpop.permute.xlu0 %435
      %v438 = vsel %vm276, %v432, 0
      %v441 = vsel %vm301, %v410, 0
      %v444 = vsel %vm301, %v430, 0
      %446 = vmatpush.msra.mxu0 0.0
      %447 = vmatpush.msra.mxu0 0.0
      %448 = vmatpush.msra.mxu0 0.0
      %449 = vmatpush.msra.mxu0 0.0
      %450 = vmatpush.msra.mxu0 0.0
      %451 = vmatpush.msra.mxu0 0.0
      %452 = vmatpush.msra.mxu0 0.0
      %453 = vmatpush.msra.mxu0 0.0
      %454 = vmatpush.msra.mxu0 0.0
      %455 = vmatpush.msra.mxu0 0.0
      %456 = vmatpush.msra.mxu0 0.0
      %457 = vmatpush.msra.mxu0 0.0
      %458 = vmatpush.msra.mxu0 0.0
      %459 = vmatpush.msra.mxu0 0.0
      %460 = vmatpush.msra.mxu0 0.0
      %461 = vmatpush.msra.mxu0 %v441
      %462 = vmatmul.f32.gmra.mxu0 %v438
      %v463 = vpop.f32.mrf.mxu0
      %v464 = vadd.f32 %v436, %v463
      %465 = vdwg.mxu0
      %466 = vmatpush.msra.mxu0 0.0
      %467 = vmatpush.msra.mxu0 0.0
      %468 = vmatpush.msra.mxu0 0.0
      %469 = vmatpush.msra.mxu0 0.0
      %470 = vmatpush.msra.mxu0 0.0
      %471 = vmatpush.msra.mxu0 0.0
      %472 = vmatpush.msra.mxu0 0.0
      %473 = vmatpush.msra.mxu0 0.0
      %474 = vmatpush.msra.mxu0 0.0
      %475 = vmatpush.msra.mxu0 0.0
      %476 = vmatpush.msra.mxu0 0.0
      %477 = vmatpush.msra.mxu0 0.0
      %478 = vmatpush.msra.mxu0 0.0
      %479 = vmatpush.msra.mxu0 0.0
      %480 = vmatpush.msra.mxu0 0.0
      %481 = vmatpush.msra.mxu0 %v444
      %482 = vmatmul.f32.gmra.mxu0 %v438
      %v483 = vpop.f32.mrf.mxu0
      %v484 = vadd.f32 %v436, %v483
      %485 = vdwg.mxu0
      %486 = vst [vmem:[#allocation1] ss:$2 sm:$0xff] %v171
      %v487 = vld.sshfl [vmem:[#allocation1] sm:$0xff pattern:$0x75316420]
      %v488 = vld.sshfl [vmem:[#allocation1 + $0x8] sm:$0xff pattern:$0x75316420]
      %v491 = vadd.f32 %v464, %v487
      %v492 = vadd.f32 %v484, %v488
      %v495 = vrot.slane %v492, 4
      %v496 = vsel %vm185, %v491, %v495
      %498 = vst [vmem:[%s170] sm:$0xff] %v496
      %p499 = scmp.lt.s32.totalorder %s14, 1
      %s500 = scalar_select %p499, %s14, 1
      %s501 = smul.addr %s500, 2
      %s502 = smul.addr %s501, 4
      %s503 = scalar_lea.vmem %s3, %s502
      // Predicated region
      $region33: #{nonlocal_block_pallas.1} parent=31 // pred_check
        %p504 = pneg %p100
      $region34: #{nonlocal_block_pallas.1} parent=31 // pred_check_branch
        %506 = sbr.rel (%p504) target = $region36
      $region35: #{nonlocal_block_pallas.1} parent=31 // pred_region
        _
      $region36: #{nonlocal_block_pallas.1} parent=31 // pred_fallthru
        _
    $region32: #{nonlocal_block_pallas.1} parent=5 // pred_fallthru
      _
    %p507 = scmp.le.s32.totalorder 2, %s9
    // Predicated region
    $region37: #{nonlocal_block_pallas.1} parent=5 // pred_check
      %p508 = pneg %p507
    $region38: #{nonlocal_block_pallas.1} parent=5 // pred_check_branch
      %510 = sbr.rel (%p508) target = $region40
    $region39: #{nonlocal_block_pallas.1} parent=5 // pred_region
      %s511 = ssub.s32 %s9, 2
      // Predicated region
      $region41: #{nonlocal_block_pallas.1} parent=39 // pred_check
        %p512 = pneg %p106
      $region42: #{nonlocal_block_pallas.1} parent=39 // pred_check_branch
        %514 = sbr.rel (%p512) target = $region44
      $region43: #{nonlocal_block_pallas.1} parent=39 // pred_region
        %p515 = scmp.lt.s32.totalorder %s15, 1
        %s516 = scalar_select %p515, %s15, 1
        %s517 = smul.addr %s516, 2
        %s518 = smul.addr %s517, 4
        %s519 = scalar_lea.vmem %s3, %s518
      $region44: #{nonlocal_block_pallas.1} parent=39 // pred_fallthru
        _
    $region40: #{nonlocal_block_pallas.1} parent=5 // pred_fallthru
      _
  $region6: #{nonlocal_block_pallas.1} parent=0 // loop_footer
    %s13 = sadd.s32 1, %s9
  $region7: #{nonlocal_block_pallas.1} parent=0 // loop_footer_branch
    %8 = sbr.rel target = $region3
  $region8: #{nonlocal_block_pallas.1} parent=0 // loop_exit
    _

</llo_original>
